<compile_context>
chip_gen: v7x
topology: tpu7x:2x2x1
jax: 0.10.0
libtpu: 0.0.40
codegen_flags: <defaults>
</compile_context>

<pallas_src>
import jax
import jax.numpy as jnp
from jax.experimental import pallas as pl
from jax.experimental.pallas import tpu as pltpu


def _ignore_cam_rows_kernel(x_ref, o_ref):
    # o_ref is (TB, keep); copy the first `keep` feature columns of the tile.
    keep = o_ref.shape[1]
    o_ref[...] = x_ref[:, :keep]


def _ignore_cam_block_kernel(x_ref, o_ref):
    # Feature-tiled fallback: output column c == input column c, so the block
    # copy is the identity (Pallas masks the out-of-range tail of edge blocks).
    o_ref[...] = x_ref[...]


def _sublane_pack(dtype) -> int:
    """Rows per packed vreg sublane group: 8 (f32), 16 (bf16), 32 (int8/fp8)."""
    itemsize = jnp.dtype(dtype).itemsize
    return 8 * max(1, 4 // itemsize)


def ignore_cam(
    x: jax.Array,
    *,
    max_rows_per_tile: int | None = None,
    vmem_budget_bytes: int = 8 * 1024 * 1024,
    buffer_count: int | None = None,
    force_kernel: bool = False,
) -> jax.Array:
    """Pallas equivalent of IngoreCam.forward: x[:, :-3]."""
    B, F = x.shape
    assert F > 3, "need at least 4 features to drop the last 3"
    keep = F - 3
    itemsize = jnp.dtype(x.dtype).itemsize
    out_shape = jax.ShapeDtypeStruct((B, keep), x.dtype)

    # Tiny inputs: kernel launch + per-step overhead dwarfs the copy; a plain
    # slice fuses into the surrounding XLA program instead.
    if not force_kernel and B * F * itemsize < 256 * 1024:
        return x[:, :-3]

    pack = _sublane_pack(x.dtype)
    cost = pl.CostEstimate(
        flops=0,
        transcendentals=0,
        bytes_accessed=(B * F + B * keep) * itemsize,
    )

    def _spec(shape, index_map):
        if buffer_count is None:
            return pl.BlockSpec(shape, index_map)
        return pl.BlockSpec(shape, index_map, pipeline_mode=pl.Buffered(buffer_count))

    # Per tile row we hold F (input) + keep (output) elements, double-buffered.
    bytes_per_row = 2 * (F + keep) * itemsize
    budget_rows = vmem_budget_bytes // max(bytes_per_row, 1)

    if budget_rows >= min(pack, B):
        # --- Batch-only tiling: full-width, lane-dense rows. ---
        tb = max(pack, (budget_rows // pack) * pack)
        tb = min(tb, 1024)  # past the measured HBM-roofline knee; saves VMEM on v7x
        if max_rows_per_tile is not None:
            tb = min(tb, max(pack, (max_rows_per_tile // pack) * pack))
        if B <= tb:
            tb = B  # single block == full dim, tiling rule satisfied

        grid = (pl.cdiv(B, tb),)
        return pl.pallas_call(
            _ignore_cam_rows_kernel,
            out_shape=out_shape,
            grid=grid,
            in_specs=[_spec((tb, F), lambda i: (i, 0))],
            out_specs=_spec((tb, keep), lambda i: (i, 0)),
            compiler_params=pltpu.CompilerParams(
                dimension_semantics=("parallel",),
            ),
            cost_estimate=cost,
        )(x)

    # --- Fallback for very wide rows: tile the feature axis too (128-multiple
    # blocks), so even multi-MB rows never exceed the scoped VMEM budget. ---
    tb = pack if B > pack else B
    tf = (vmem_budget_bytes // (4 * max(tb, 1) * itemsize) // 128) * 128
    tf = max(128, tf)
    grid = (pl.cdiv(B, tb), pl.cdiv(keep, tf))
    return pl.pallas_call(
        _ignore_cam_block_kernel,
        out_shape=out_shape,
        grid=grid,
        in_specs=[_spec((tb, tf), lambda i, j: (i, j))],
        out_specs=_spec((tb, tf), lambda i, j: (i, j)),
        compiler_params=pltpu.CompilerParams(
            dimension_semantics=("parallel", "parallel"),
        ),
        cost_estimate=cost,
    )(x)


if __name__ == "__main__":
    key = jax.random.PRNGKey(0)

    # Small shape consistent with the module: batch=2, features=32.
    B, F = 2, 32
    x = jax.random.normal(key, (B, F), dtype=jnp.float32)
    ref = x[:, :-3]

    # Kernel path (forced past the tiny-input short-circuit).
    out = ignore_cam(x, force_kernel=True)
    jax.block_until_ready(out)
    assert out.shape == (B, F - 3), out.shape
    assert out.dtype == x.dtype
    assert jnp.array_equal(out, ref), "mismatch vs reference slice"

    # Default path short-circuits tiny inputs to a fusable plain slice.
    out_sc = ignore_cam(x)
    jax.block_until_ready(out_sc)
    assert jnp.array_equal(out_sc, ref), "mismatch vs reference slice (short-circuit)"

    # Tiled (multi-grid-step) path: partial final batch block and a
    # non-multiple-of-128 feature width.
    B2, F2 = 1000, 35
    x2 = jax.random.normal(jax.random.PRNGKey(1), (B2, F2), dtype=jnp.float32)
    out2 = ignore_cam(x2, max_rows_per_tile=128, force_kernel=True)
    jax.block_until_ready(out2)
    assert out2.shape == (B2, F2 - 3), out2.shape
    assert jnp.array_equal(out2, x2[:, :-3]), "mismatch vs reference slice (tiled)"

    # Feature-axis fallback path: tiny VMEM budget forces 2-D tiling with a
    # partial last feature block.
    B3, F3 = 64, 1024
    x3 = jax.random.normal(jax.random.PRNGKey(2), (B3, F3), dtype=jnp.float32)
    out3 = ignore_cam(x3, vmem_budget_bytes=32 * 1024, force_kernel=True)
    jax.block_until_ready(out3)
    assert out3.shape == (B3, F3 - 3), out3.shape
    assert jnp.array_equal(out3, x3[:, :-3]), "mismatch vs reference slice (2-D tiled)"

    print("KERNEL_OK")
</pallas_src>

<mosaic_0001>
module attributes {stable_mosaic.version = 11 : i64} {
  func.func @_ignore_cam_rows_kernel(%arg0: i32, %arg1: memref<2x32xf32, #tpu.memory_space<vmem>>, %arg2: memref<2x29xf32, #tpu.memory_space<vmem>>) attributes {dimension_semantics = [#tpu.dimension_semantics<parallel>], iteration_bounds = array<i64: 1>, scalar_prefetch = 0 : i64, scratch_operands = 0 : i64, tpu.core_type = #tpu.core_type<tc>, window_params = [{transform_indices = @transform_0, window_bounds = array<i64: 2, 32>}, {transform_indices = @transform_1, window_bounds = array<i64: 2, 29>}]} {
    %c0 = arith.constant 0 : index
    %c0_0 = arith.constant 0 : index
    %0 = vector.load %arg1[%c0, %c0_0] : memref<2x32xf32, #tpu.memory_space<vmem>>, vector<2x29xf32>
    %c0_1 = arith.constant 0 : index
    %c0_2 = arith.constant 0 : index
    %1 = vector.load %arg2[%c0_1, %c0_2] : memref<2x29xf32, #tpu.memory_space<vmem>>, vector<2x29xf32>
    tpu.vector_store %arg2[%c0_1, %c0_2], %0 {strides = array<i32>} : memref<2x29xf32, #tpu.memory_space<vmem>>, vector<2x29xf32>,
    return
  }
  func.func @transform_0(%arg0: i32) -> (i32, i32) {
    %c0_i32 = arith.constant 0 : i32
    %c0_i32_0 = arith.constant 0 : i32
    return %arg0, %c0_i32 : i32, i32
  }
  func.func @transform_1(%arg0: i32) -> (i32, i32) {
    %c0_i32 = arith.constant 0 : i32
    %c0_i32_0 = arith.constant 0 : i32
    return %arg0, %c0_i32 : i32, i32
  }
}

</mosaic_0001>

<llo_original>
// kernel: tpu_custom_call.1
$region0: #{tpu_custom_call.1}
  #allocation0 [shape = 'u32[]', space=smem, size = 0x4, offset = 0x4, fixed_abs, tag = 'smem constant byte address 0x4 - core index']
  #allocation1 [shape = 'u32[144,128]{1,0:T(1,128)}', space=vmem, size = 0x12000, scoped, tag = 'internal scratch']
  %s0 = inlined_call_operand.hbm [shape: f32[2,32], index: 0, kind: input, shape index: {}]
  %s1 = inlined_call_operand.hbm [shape: f32[2,29], index: 1, kind: output, shape index: {}]
  %s2 = sld [smem:[#allocation0]]
  $region18: #{tpu_custom_call.1} parent=0
    _
  %s4 = ssub.s32 1, %s2
  %s5 = scalar_select 0, %s4, %s2
  $region1: #{tpu_custom_call.1} parent=0
    #allocation2 [shape = 'u8[1024]{0}', space=vmem, size = 0x400, scoped, tag = 'input window, operand 0, single buffered']
    #allocation3 [shape = 's32[1]{0}', space=sflag, size = 0x4, scoped, tag = 'scoped memory for tpu_custom_call.1']
    #allocation4 [shape = 's32[1]{0}', space=sflag, size = 0x4, scoped, tag = 'scoped memory for tpu_custom_call.1']
    #allocation5 [shape = 'u8[1024]{0}', space=vmem, size = 0x400, scoped, tag = 'output window, operand 0, single buffered']
    %6 = vsyncpa [#allocation3], 0
    %7 = vsyncpa [#allocation4], 0
    // Predicated region
    $region2: #{tpu_custom_call.1} parent=1 // pred_check
      _
    $region3: #{tpu_custom_call.1} parent=1 // pred_check_branch
      %9 = sbr.rel (0) target = $region5
    $region4: #{tpu_custom_call.1} parent=1 // pred_region
      %s11 = ssub.s32 32, 32
      %12 = vsyncadd [#allocation3], %s11
      %s14 = sshll.u32 [#allocation2], 4
      %s15 = int_to_ptr.vmem [resolvable:$true] %s14
      %17 = dma.hbm_to_vmem [thread:$0]  %s0, 32, %s15, [#allocation3]
    $region5: #{tpu_custom_call.1} parent=1 // pred_fallthru
      _
    // Predicated region
    $region6: #{tpu_custom_call.1} parent=1 // pred_check
      _
    $region7: #{tpu_custom_call.1} parent=1 // pred_check_branch
      %19 = sbr.rel (0) target = $region9
    $region8: #{tpu_custom_call.1} parent=1 // pred_region
      %20 = dma.done [#allocation3], 32
    $region9: #{tpu_custom_call.1} parent=1 // pred_fallthru
      _
    %v21 = vld [vmem:[#allocation2] sm:$0x3]
    %vm22 = vcmask 230400
    %23 = vst.msk [vmem:[#allocation5] sm:$0x3] %vm22, %v21
    // Predicated region
    $region10: #{tpu_custom_call.1} parent=1 // pred_check
      _
    $region11: #{tpu_custom_call.1} parent=1 // pred_check_branch
      %25 = sbr.rel (0) target = $region13
    $region12: #{tpu_custom_call.1} parent=1 // pred_region
      %s27 = ssub.s32 32, 32
      %28 = vsyncadd [#allocation4], %s27
      %s30 = sshll.u32 [#allocation5], 4
      %s31 = int_to_ptr.vmem [resolvable:$true] %s30
      %33 = dma.vmem_to_hbm [thread:$0]  %s31, 32, %s1, [#allocation4]
    $region13: #{tpu_custom_call.1} parent=1 // pred_fallthru
      _
    // Predicated region
    $region14: #{tpu_custom_call.1} parent=1 // pred_check
      _
    $region15: #{tpu_custom_call.1} parent=1 // pred_check_branch
      %35 = sbr.rel (0) target = $region17
    $region16: #{tpu_custom_call.1} parent=1 // pred_region
      %36 = dma.done [#allocation4], 32
    $region17: #{tpu_custom_call.1} parent=1 // pred_fallthru
      _
    %37 = vsyncpa [#allocation3], 1
    %38 = vsyncpa [#allocation4], 1

</llo_original>
